<compile_context>
chip_gen: v5e
topology: v5e:2x2
jax: 0.10.0
libtpu: 0.0.40
codegen_flags: <defaults>
</compile_context>

<pallas_src>
import jax
import jax.numpy as jnp
from jax.experimental import pallas as pl
from jax.experimental.pallas import tpu as pltpu


def _add_pos_kernel(spatial_ref, temporal_ref, x_ref, o_ref):
    # spatial_ref : (1, S, D)       full spatial table, resident across the grid
    # temporal_ref: (1, k, D)       temporal rows for this chunk of k time-steps
    # x_ref/o_ref : (bk, k, S, D)   bk batch elements x k time-steps
    spatial = spatial_ref[...][:, None, :, :]     # (1, 1, S, D) — broadcast over bk, k
    temporal = temporal_ref[...][:, :, None, :]   # (1, k, 1, D) — broadcast over bk, S
    o_ref[...] = (x_ref[...] + spatial + temporal).astype(o_ref.dtype)


def _largest_divisor_leq(total, per_unit_bytes, budget_bytes):
    """Largest divisor d of `total` with d * per_unit_bytes <= budget (>= 1)."""
    best = 1
    for d in range(1, total + 1):
        if total % d == 0 and d * per_unit_bytes <= budget_bytes:
            best = d
    return best


def add_spatiotemporal_position_embs(x, pos_embed_spatial, pos_embed_temporal,
                                     grid_size, *, target_block_bytes=2 << 20):
    """x: (B, T*H*W, D); returns x + pos_embed (same shape/dtype)."""
    T, H, W = grid_size
    S = H * W
    B, L, D = x.shape
    assert L == T * S
    assert pos_embed_spatial.shape == (1, S, D)
    assert pos_embed_temporal.shape == (1, T, D)

    # Keep in-kernel math and HBM traffic in the activation dtype.
    pos_embed_spatial = pos_embed_spatial.astype(x.dtype)
    pos_embed_temporal = pos_embed_temporal.astype(x.dtype)

    itemsize = jnp.dtype(x.dtype).itemsize
    bytes_per_t = S * D * itemsize

    # k = time-steps fused per grid step (k | T), targeting ~target_block_bytes.
    k = _largest_divisor_leq(T, bytes_per_t, target_block_bytes)
    # If a whole (T, S, D) slab is still small, also fuse bk batch elements (bk | B).
    bk = 1
    if k == T:
        bk = _largest_divisor_leq(B, T * bytes_per_t, target_block_bytes)

    # Megacore guard: keep >= 2 grid steps whenever there is >= 2 steps' worth of work.
    if (B // bk) * (T // k) < 2:
        if bk > 1:
            bk = max(d for d in range(1, bk) if B % d == 0)
        elif k > 1:
            k = max(d for d in range(1, k) if T % d == 0)
    n_b = B // bk
    n_chunks = T // k

    # Free wrapper-side reshapes: all blocks below cover full trailing (S, D) /
    # (k, D) planes, so the (8,128) constraint holds for any S, D, k, dtype.
    x4 = x.reshape(B, T, S, D)
    temporal_r = pos_embed_temporal.reshape(n_chunks, k, D)

    out4 = pl.pallas_call(
        _add_pos_kernel,
        out_shape=jax.ShapeDtypeStruct((B, T, S, D), x.dtype),
        grid_spec=pltpu.PrefetchScalarGridSpec(
            num_scalar_prefetch=0,
            grid=(n_b, n_chunks),
            in_specs=[
                # spatial table: resident, same block every step
                pl.BlockSpec((1, S, D), lambda b, tc: (0, 0, 0)),
                # temporal rows for this chunk, selected purely via the index_map
                pl.BlockSpec((1, k, D), lambda b, tc: (tc, 0, 0)),
                # x: bk batch elements x k fused time-steps
                pl.BlockSpec((bk, k, S, D), lambda b, tc: (b, tc, 0, 0)),
            ],
            out_specs=pl.BlockSpec((bk, k, S, D), lambda b, tc: (b, tc, 0, 0)),
        ),
        compiler_params=pltpu.CompilerParams(
            dimension_semantics=("parallel", "parallel")),
    )(pos_embed_spatial, temporal_r, x4)

    return out4.reshape(B, L, D)


def reference(x, pos_embed_spatial, pos_embed_temporal, grid_size):
    T, H, W = grid_size
    S = H * W
    pos = (jnp.tile(pos_embed_spatial, (1, T, 1))
           + jnp.repeat(pos_embed_temporal, S, axis=1))
    return x + pos


if __name__ == "__main__":
    # Module config (small, TPU-friendly): grid_size = (T, H, W), embed_dim = D
    grid_size = (2, 4, 4)          # T=2, H=4, W=4  -> S=16, L=32
    D = 128
    B = 2
    T, H, W = grid_size
    S, L = H * W, T * H * W

    key = jax.random.PRNGKey(0)
    k_sp, k_tm, k_x = jax.random.split(key, 3)

    # Deterministic parameter init matching nn.init.normal_(std=0.02)
    pos_embed_spatial = 0.02 * jax.random.normal(k_sp, (1, S, D), jnp.float32)
    pos_embed_temporal = 0.02 * jax.random.normal(k_tm, (1, T, D), jnp.float32)

    x = jax.random.normal(k_x, (B, L, D), jnp.float32)

    out = add_spatiotemporal_position_embs(
        x, pos_embed_spatial, pos_embed_temporal, grid_size)
    out = jax.block_until_ready(out)

    ref = reference(x, pos_embed_spatial, pos_embed_temporal, grid_size)
    assert out.shape == x.shape and out.dtype == x.dtype
    assert jnp.allclose(out, ref, atol=1e-6, rtol=1e-6)

    print("KERNEL_OK")
</pallas_src>

<mosaic_0001>
module attributes {stable_mosaic.version = 11 : i64} {
  func.func @_add_pos_kernel(%arg0: i32, %arg1: i32, %arg2: memref<1x16x128xf32, #tpu.memory_space<vmem>>, %arg3: memref<1x2x128xf32, #tpu.memory_space<vmem>>, %arg4: memref<1x2x16x128xf32, #tpu.memory_space<vmem>>, %arg5: memref<1x2x16x128xf32, #tpu.memory_space<vmem>>) attributes {dimension_semantics = [#tpu.dimension_semantics<parallel>, #tpu.dimension_semantics<parallel>], iteration_bounds = array<i64: 2, 1>, scalar_prefetch = 0 : i64, scratch_operands = 0 : i64, tpu.core_type = #tpu.core_type<tc>, window_params = [{pipeline_mode = #tpu.pipeline_mode<synchronous>, transform_indices = @transform_0, window_bounds = array<i64: 1, 16, 128>}, {transform_indices = @transform_1, window_bounds = array<i64: 1, 2, 128>}, {transform_indices = @transform_2, window_bounds = array<i64: 1, 2, 16, 128>}, {transform_indices = @transform_3, window_bounds = array<i64: 1, 2, 16, 128>}]} {
    %c0 = arith.constant 0 : index
    %c0_0 = arith.constant 0 : index
    %c0_1 = arith.constant 0 : index
    %0 = vector.load %arg2[%c0, %c0_0, %c0_1] : memref<1x16x128xf32, #tpu.memory_space<vmem>>, vector<1x16x128xf32>
    %1 = vector.shape_cast %0 : vector<1x16x128xf32> to vector<1x1x16x128xf32>
    %c0_2 = arith.constant 0 : index
    %c0_3 = arith.constant 0 : index
    %c0_4 = arith.constant 0 : index
    %2 = vector.load %arg3[%c0_2, %c0_3, %c0_4] : memref<1x2x128xf32, #tpu.memory_space<vmem>>, vector<1x2x128xf32>
    %3 = vector.shape_cast %2 : vector<1x2x128xf32> to vector<1x2x1x128xf32>
    %c0_5 = arith.constant 0 : index
    %c0_6 = arith.constant 0 : index
    %c0_7 = arith.constant 0 : index
    %c0_8 = arith.constant 0 : index
    %4 = vector.load %arg4[%c0_5, %c0_6, %c0_7, %c0_8] : memref<1x2x16x128xf32, #tpu.memory_space<vmem>>, vector<1x2x16x128xf32>
    %5 = vector.broadcast %1 : vector<1x1x16x128xf32> to vector<1x2x16x128xf32>
    %6 = arith.addf %4, %5 : vector<1x2x16x128xf32>
    %7 = vector.broadcast %3 : vector<1x2x1x128xf32> to vector<1x2x16x128xf32>
    %8 = arith.addf %6, %7 : vector<1x2x16x128xf32>
    %c0_9 = arith.constant 0 : index
    %c0_10 = arith.constant 0 : index
    %c0_11 = arith.constant 0 : index
    %c0_12 = arith.constant 0 : index
    %9 = vector.load %arg5[%c0_9, %c0_10, %c0_11, %c0_12] : memref<1x2x16x128xf32, #tpu.memory_space<vmem>>, vector<1x2x16x128xf32>
    tpu.vector_store %arg5[%c0_9, %c0_10, %c0_11, %c0_12], %8 {strides = array<i32>} : memref<1x2x16x128xf32, #tpu.memory_space<vmem>>, vector<1x2x16x128xf32>,
    return
  }
  func.func @transform_0(%arg0: i32, %arg1: i32) -> (i32, i32, i32) {
    %c0_i32 = arith.constant 0 : i32
    %c0_i32_0 = arith.constant 0 : i32
    %c0_i32_1 = arith.constant 0 : i32
    %c0_i32_2 = arith.constant 0 : i32
    return %c0_i32, %c0_i32_0, %c0_i32_1 : i32, i32, i32
  }
  func.func @transform_1(%arg0: i32, %arg1: i32) -> (i32, i32, i32) {
    %c0_i32 = arith.constant 0 : i32
    %c0_i32_0 = arith.constant 0 : i32
    %c0_i32_1 = arith.constant 0 : i32
    return %arg1, %c0_i32, %c0_i32_0 : i32, i32, i32
  }
  func.func @transform_2(%arg0: i32, %arg1: i32) -> (i32, i32, i32, i32) {
    %c0_i32 = arith.constant 0 : i32
    %c0_i32_0 = arith.constant 0 : i32
    %c0_i32_1 = arith.constant 0 : i32
    return %arg0, %arg1, %c0_i32, %c0_i32_0 : i32, i32, i32, i32
  }
  func.func @transform_3(%arg0: i32, %arg1: i32) -> (i32, i32, i32, i32) {
    %c0_i32 = arith.constant 0 : i32
    %c0_i32_0 = arith.constant 0 : i32
    %c0_i32_1 = arith.constant 0 : i32
    return %arg0, %arg1, %c0_i32, %c0_i32_0 : i32, i32, i32, i32
  }
}

</mosaic_0001>

<llo_original>
// kernel: tpu_custom_call.1
$region0: #{tpu_custom_call.1}
  #allocation0 [shape = 'u32[]', space=smem, size = 0x4, offset = 0x4, fixed_abs, tag = 'smem constant byte address 0x4 - core index']
  #allocation1 [shape = 'u32[72,128]{1,0:T(1,128)}', space=vmem, size = 0x9000, scoped, tag = 'internal scratch']
  %s0 = inlined_call_operand.hbm [shape: f32[1,16,128], index: 0, kind: input, shape index: {}]
  %s1 = inlined_call_operand.hbm [shape: f32[1,2,128], index: 1, kind: input, shape index: {}]
  %s2 = inlined_call_operand.hbm [shape: f32[2,2,16,128], index: 2, kind: input, shape index: {}]
  %s3 = inlined_call_operand.hbm [shape: f32[2,2,16,128], index: 3, kind: output, shape index: {}]
  %s4 = sld [smem:[#allocation0]]
  $region57: #{tpu_custom_call.1} parent=0
    _
  %s6 = ssub.s32 1, %s4
  %s7 = scalar_select 0, %s6, %s4
  $region1: #{tpu_custom_call.1} parent=0
    #allocation2 [shape = 'u8[8192]{0}', space=vmem, size = 0x2000, scoped, tag = 'input window, operand 0, single buffered']
    #allocation3 [shape = 's32[2]{0}', space=sflag, size = 0x8, scoped, tag = 'scoped memory for tpu_custom_call.1']
    #allocation4 [shape = 's32[2]{0}', space=sflag, size = 0x8, scoped, tag = 'scoped memory for tpu_custom_call.1']
    #allocation5 [shape = 'u8[1024]{0}', space=vmem, size = 0x400, scoped, tag = 'input window, operand 1, single buffered']
    #allocation6 [shape = 's32[1]{0}', space=sflag, size = 0x4, scoped, tag = 'scoped memory for tpu_custom_call.1']
    #allocation7 [shape = 'u8[32768]{0}', space=vmem, size = 0x8000, scoped, tag = 'input window, operand 2']
    #allocation8 [shape = 'u8[32768]{0}', space=vmem, size = 0x8000, scoped, tag = 'output window, operand 0']
    %8 = vsyncpa [#allocation3], 0
    %9 = vsyncpa [#allocation6], 0
    %10 = vsyncpa [#allocation4], 0
    %s11 = scalar_lea.sflag [#allocation4], 1
    %12 = vsyncpa %s11, 0
    loop: start=0, step=1, limit=4
    $region2: #{tpu_custom_call.1} parent=1 // loop_pre_header
      _
    $region3: #{tpu_custom_call.1} parent=1 // loop_header
      %s14 = sphi 0, %s18
      %p15 = scmp.ge.s32.totalorder %s14, 4
      %s21 = sphi 0, %s33
      %s22 = sphi 0, %s29
      %s23 = sphi 0, %s21
      %s24 = sphi 0, %s22
      %s25 = sphi 0, %s23
      %s26 = sphi 0, %s24
      %s34 = sphi 0, %s34
      %s36 = sphi 0, %s34
      %s37 = sphi 0, %s36
      %s51 = sphi 0, %s37
      %s57 = sphi 0, %s59
      %s60 = sphi 0, %s57
      %s61 = sphi 0, %s60
      %s77 = sphi 0, %s61
      %s85 = sphi 0, %s87
      %s88 = sphi 0, %s85
      %s89 = sphi 0, %s88
      %s105 = sphi 0, %s89
      %s113 = sphi 0, %s115
      %s116 = sphi 0, %s113
      %s117 = sphi 0, %s116
      %s133 = sphi 0, %s117
    $region4: #{tpu_custom_call.1} parent=1 // loop_header_branch
      %17 = sbr.rel (%p15) target = $region8
    $region5: #{tpu_custom_call.1} parent=1 // loop_body
      %s19 = ssub.s32 %s14, 1
      %s20 = ssub.s32 %s14, 2
      %s27 = sadd.s32 1, %s22
      %p28 = scmp.ge.s32.totalorder %s27, 1
      %s29 = scalar_select %p28, 0, %s27
      %s30 = sadd.s32 1, %s21
      %s31 = scalar_select %p28, %s30, %s21
      %p32 = scmp.ge.s32.totalorder %s31, 2
      %s33 = scalar_select %p32, 0, %s31
      %s35 = sadd.s32 %s34, 1
      %p38 = scmp.eq.s32.totalorder %s14, 1
      %p39 = scmp.ne.s32.totalorder %s34, %s36
      %p40 = scmp.eq.s32.totalorder %s14, 0
      %p41 = por %p39, %p40
      %p42 = scmp.ne.s32.totalorder %s34, %s36
      %p43 = scmp.eq.s32.totalorder %s19, 1
      %p44 = por %p42, %p43
      %p45 = scmp.ne.s32.totalorder %s36, %s37
      %p46 = scmp.eq.s32.totalorder %s19, 0
      %p47 = por %p45, %p46
      %p48 = scmp.ne.s32.totalorder %s36, %s37
      %p49 = scmp.eq.s32.totalorder %s20, 1
      %p50 = por %p48, %p49
      %p52 = scmp.ne.s32.totalorder %s37, %s51
      %p53 = scmp.eq.s32.totalorder %s20, 0
      %p54 = por %p52, %p53
      %s55 = ssub.s32 %s22, %s29
      %p56 = scmp.eq.s32.totalorder %s55, 0
      %s58 = sadd.s32 %s57, 1
      %s59 = scalar_select %p56, %s57, %s58
      %p62 = pneg %p56
      %p63 = scmp.eq.s32.totalorder %s14, 1
      %p64 = por %p62, %p63
      %p65 = scmp.ne.s32.totalorder %s57, %s60
      %p66 = scmp.eq.s32.totalorder %s14, 0
      %p67 = por %p65, %p66
      %p68 = scmp.ne.s32.totalorder %s57, %s60
      %p69 = scmp.eq.s32.totalorder %s19, 1
      %p70 = por %p68, %p69
      %p71 = scmp.ne.s32.totalorder %s60, %s61
      %p72 = scmp.eq.s32.totalorder %s19, 0
      %p73 = por %p71, %p72
      %p74 = scmp.ne.s32.totalorder %s60, %s61
      %p75 = scmp.eq.s32.totalorder %s20, 1
      %p76 = por %p74, %p75
      %p78 = scmp.ne.s32.totalorder %s61, %s77
      %p79 = scmp.eq.s32.totalorder %s20, 0
      %p80 = por %p78, %p79
      %s81 = ssub.s32 %s21, %s33
      %s82 = ssub.s32 %s22, %s29
      %s83 = sor.u32 %s81, %s82
      %p84 = scmp.eq.s32.totalorder %s83, 0
      %s86 = sadd.s32 %s85, 1
      %s87 = scalar_select %p84, %s85, %s86
      %p90 = pneg %p84
      %p91 = scmp.eq.s32.totalorder %s14, 1
      %p92 = por %p90, %p91
      %p93 = scmp.ne.s32.totalorder %s85, %s88
      %p94 = scmp.eq.s32.totalorder %s14, 0
      %p95 = por %p93, %p94
      %p96 = scmp.ne.s32.totalorder %s85, %s88
      %p97 = scmp.eq.s32.totalorder %s19, 1
      %p98 = por %p96, %p97
      %p99 = scmp.ne.s32.totalorder %s88, %s89
      %p100 = scmp.eq.s32.totalorder %s19, 0
      %p101 = por %p99, %p100
      %p102 = scmp.ne.s32.totalorder %s88, %s89
      %p103 = scmp.eq.s32.totalorder %s20, 1
      %p104 = por %p102, %p103
      %p106 = scmp.ne.s32.totalorder %s89, %s105
      %p107 = scmp.eq.s32.totalorder %s20, 0
      %p108 = por %p106, %p107
      %s109 = ssub.s32 %s21, %s33
      %s110 = ssub.s32 %s22, %s29
      %s111 = sor.u32 %s109, %s110
      %p112 = scmp.eq.s32.totalorder %s111, 0
      %s114 = sadd.s32 %s113, 1
      %s115 = scalar_select %p112, %s113, %s114
      %p118 = pneg %p112
      %p119 = scmp.eq.s32.totalorder %s14, 1
      %p120 = por %p118, %p119
      %p121 = scmp.ne.s32.totalorder %s113, %s116
      %p122 = scmp.eq.s32.totalorder %s14, 0
      %p123 = por %p121, %p122
      %p124 = scmp.ne.s32.totalorder %s113, %s116
      %p125 = scmp.eq.s32.totalorder %s19, 1
      %p126 = por %p124, %p125
      %p127 = scmp.ne.s32.totalorder %s116, %s117
      %p128 = scmp.eq.s32.totalorder %s19, 0
      %p129 = por %p127, %p128
      %p130 = scmp.ne.s32.totalorder %s116, %s117
      %p131 = scmp.eq.s32.totalorder %s20, 1
      %p132 = por %p130, %p131
      %p134 = scmp.ne.s32.totalorder %s117, %s133
      %p135 = scmp.eq.s32.totalorder %s20, 0
      %p136 = por %p134, %p135
      %p137 = scmp.le.s32.totalorder 1, %s14
      %p138 = scmp.lt.s32.totalorder %s14, 3
      %p139 = pnand %p137, %p138
      %p140 = pneg %p139
      // Predicated region
      $region9: #{tpu_custom_call.1} parent=5 // pred_check
        _
      $region10: #{tpu_custom_call.1} parent=5 // pred_check_branch
        %142 = sbr.rel (%p139) target = $region12
      $region11: #{tpu_custom_call.1} parent=5 // pred_region
        %s143 = ssub.s32 %s14, 1
        // Predicated region
        $region13: #{tpu_custom_call.1} parent=11 // pred_check
          %p144 = pneg %p47
        $region14: #{tpu_custom_call.1} parent=11 // pred_check_branch
          %146 = sbr.rel (%p144) target = $region16
        $region15: #{tpu_custom_call.1} parent=11 // pred_region
          %148 = vsyncadd [#allocation3], 0
          %s149 = sshll.u32 %s0, 4
          %s150 = int_to_ptr.hbm [resolvable:$true] %s149
          %s151 = sshll.u32 [#allocation2], 4
          %s152 = int_to_ptr.vmem [resolvable:$true] %s151
          %157 = dma.hbm_to_vmem [thread:$0]  %s150, 256, %s152, [#allocation3], 128, 128, 8
        $region16: #{tpu_custom_call.1} parent=11 // pred_fallthru
          _
        // Predicated region
        $region17: #{tpu_custom_call.1} parent=11 // pred_check
          %p158 = pneg %p73
        $region18: #{tpu_custom_call.1} parent=11 // pred_check_branch
          %160 = sbr.rel (%p158) target = $region20
        $region19: #{tpu_custom_call.1} parent=11 // pred_region
          %162 = vsyncadd [#allocation6], 0
          %s163 = smul.addr %s24, 2
          %s164 = scalar_lea.hbm %s1, %s163
          %s166 = sshll.u32 %s164, 4
          %s167 = int_to_ptr.hbm [resolvable:$true] %s166
          %s168 = sshll.u32 [#allocation5], 4
          %s169 = int_to_ptr.vmem [resolvable:$true] %s168
          %171 = dma.hbm_to_vmem [thread:$0]  %s167, 32, %s169, [#allocation6]
        $region20: #{tpu_custom_call.1} parent=11 // pred_fallthru
          _
      $region12: #{tpu_custom_call.1} parent=5 // pred_fallthru
        _
      %p172 = scmp.lt.s32.totalorder %s14, 2
      // Predicated region
      $region21: #{tpu_custom_call.1} parent=5 // pred_check
        %p173 = pneg %p172
      $region22: #{tpu_custom_call.1} parent=5 // pred_check_branch
        %175 = sbr.rel (%p173) target = $region24
      $region23: #{tpu_custom_call.1} parent=5 // pred_region
        // Predicated region
        $region25: #{tpu_custom_call.1} parent=23 // pred_check
          %p176 = pneg %p95
        $region26: #{tpu_custom_call.1} parent=23 // pred_check_branch
          %178 = sbr.rel (%p176) target = $region28
        $region27: #{tpu_custom_call.1} parent=23 // pred_region
          %s179 = sand.u32 %s14, 1
          %s180 = scalar_lea.sflag [#allocation3], %s179
          %s181 = sand.u32 %s85, 1
          %s182 = smul.addr %s181, 32
          %s183 = scalar_lea.vmem [#allocation7], %s182
          %s184 = smul.u32 2, %s22
          %186 = vsyncadd %s180, 0
          %s187 = smul.addr %s184, 2
          %s188 = smul.addr %s21, 4
          %s189 = sadd.s32 %s187, %s188
          %s190 = smul.addr %s189, 8
          %s191 = scalar_lea.hbm %s2, %s190
          %s192 = sshll.u32 %s191, 4
          %s193 = int_to_ptr.hbm [resolvable:$true] %s192
          %s194 = sshll.u32 %s183, 4
          %s195 = int_to_ptr.vmem [resolvable:$true] %s194
          %200 = dma.hbm_to_vmem [thread:$0]  %s193, 512, %s195, %s180, 128, 128, 8
        $region28: #{tpu_custom_call.1} parent=23 // pred_fallthru
          _
      $region24: #{tpu_custom_call.1} parent=5 // pred_fallthru
        _
      %p201 = scmp.le.s32.totalorder 1, %s14
      %p202 = scmp.lt.s32.totalorder %s14, 3
      %p203 = pnand %p201, %p202
      %p204 = pneg %p203
      // Predicated region
      $region29: #{tpu_custom_call.1} parent=5 // pred_check
        _
      $region30: #{tpu_custom_call.1} parent=5 // pred_check_branch
        %206 = sbr.rel (%p203) target = $region32
      $region31: #{tpu_custom_call.1} parent=5 // pred_region
        %s207 = ssub.s32 %s14, 1
        // Predicated region
        $region33: #{tpu_custom_call.1} parent=31 // pred_check
          %p208 = pneg %p47
        $region34: #{tpu_custom_call.1} parent=31 // pred_check_branch
          %210 = sbr.rel (%p208) target = $region36
        $region35: #{tpu_custom_call.1} parent=31 // pred_region
          %212 = dma.done [#allocation3], 256
        $region36: #{tpu_custom_call.1} parent=31 // pred_fallthru
          _
        // Predicated region
        $region37: #{tpu_custom_call.1} parent=31 // pred_check
          %p213 = pneg %p73
        $region38: #{tpu_custom_call.1} parent=31 // pred_check_branch
          %215 = sbr.rel (%p213) target = $region40
        $region39: #{tpu_custom_call.1} parent=31 // pred_region
          %217 = dma.done [#allocation6], 32
        $region40: #{tpu_custom_call.1} parent=31 // pred_fallthru
          _
        %s218 = sand.u32 %s19, 1
        %s219 = scalar_lea.sflag [#allocation3], %s218
        %s220 = sand.u32 %s88, 1
        %s221 = smul.addr %s220, 32
        %s222 = scalar_lea.vmem [#allocation7], %s221
        // Predicated region
        $region41: #{tpu_custom_call.1} parent=31 // pred_check
          %p223 = pneg %p101
        $region42: #{tpu_custom_call.1} parent=31 // pred_check_branch
          %225 = sbr.rel (%p223) target = $region44
        $region43: #{tpu_custom_call.1} parent=31 // pred_region
          %227 = dma.done %s219, 512
        $region44: #{tpu_custom_call.1} parent=31 // pred_fallthru
          _
        %p228 = pneg %p47
        %p229 = pneg %p44
        %p230 = pneg %p73
        %p231 = pneg %p70
        %s232 = sand.u32 %s19, 1
        %s233 = scalar_lea.sflag [#allocation3], %s232
        %s234 = sand.u32 %s88, 1
        %s235 = smul.addr %s234, 32
        %s236 = scalar_lea.vmem [#allocation7], %s235
        %p237 = pneg %p101
        %p238 = pneg %p98
        %p239 = pneg %p129
        %p240 = pneg %p126
        %s241 = sand.u32 %s116, 1
        %s242 = scalar_lea.sflag [#allocation4], %s241
        %s243 = sand.u32 %s116, 1
        %s244 = smul.addr %s243, 32
        %s245 = scalar_lea.vmem [#allocation8], %s244
        %s246 = smul.u32 2, %s24
        %s247 = smul.u32 2, %s24
        %v248 = vld [vmem:[#allocation2] sm:$0xff]
        %v249 = vld [vmem:[#allocation2 + $0x8] sm:$0xff]
        %v250 = vld [vmem:[#allocation5] sm:$0x3]
        %v252 = vrot.slane %v250, 1
        %v253 = vld [vmem:[%s222] sm:$0xff]
        %v254 = vld [vmem:[%s222 + $0x8] sm:$0xff]
        %v255 = vld [vmem:[%s222 + $0x10] sm:$0xff]
        %v256 = vld [vmem:[%s222 + $0x18] sm:$0xff]
        %v257 = vadd.f32 %v253, %v248
        %v258 = vadd.f32 %v254, %v249
        %v259 = vadd.f32 %v255, %v248
        %v260 = vadd.f32 %v256, %v249
        %v261 = vperm.slane %v250, 0
        %v262 = vperm.slane %v252, 0
        %v265 = vadd.f32 %v257, %v261
        %v266 = vadd.f32 %v258, %v261
        %v267 = vadd.f32 %v259, %v262
        %v268 = vadd.f32 %v260, %v262
        %269 = vst [vmem:[%s245] sm:$0xff] %v265
        %270 = vst [vmem:[%s245 + $0x8] sm:$0xff] %v266
        %271 = vst [vmem:[%s245 + $0x10] sm:$0xff] %v267
        %272 = vst [vmem:[%s245 + $0x18] sm:$0xff] %v268
        %s273 = sand.u32 %s116, 1
        %s274 = scalar_lea.sflag [#allocation4], %s273
        %s275 = sand.u32 %s116, 1
        %s276 = smul.addr %s275, 32
        %s277 = scalar_lea.vmem [#allocation8], %s276
        // Predicated region
        $region45: #{tpu_custom_call.1} parent=31 // pred_check
          %p278 = pneg %p126
        $region46: #{tpu_custom_call.1} parent=31 // pred_check_branch
          %280 = sbr.rel (%p278) target = $region48
        $region47: #{tpu_custom_call.1} parent=31 // pred_region
          %s281 = smul.u32 2, %s24
          %283 = vsyncadd %s274, 0
          %s284 = smul.addr %s281, 2
          %s285 = smul.addr %s23, 4
          %s286 = sadd.s32 %s284, %s285
          %s287 = smul.addr %s286, 8
          %s288 = scalar_lea.hbm %s3, %s287
          %s289 = sshll.u32 %s277, 4
          %s290 = int_to_ptr.vmem [resolvable:$true] %s289
          %s291 = sshll.u32 %s288, 4
          %s292 = int_to_ptr.hbm [resolvable:$true] %s291
          %297 = dma.vmem_to_hbm [thread:$0]  %s290, 512, %s292, %s274, 128, 128, 8
        $region48: #{tpu_custom_call.1} parent=31 // pred_fallthru
          _
      $region32: #{tpu_custom_call.1} parent=5 // pred_fallthru
        _
      %p298 = scmp.le.s32.totalorder 2, %s14
      // Predicated region
      $region49: #{tpu_custom_call.1} parent=5 // pred_check
        %p299 = pneg %p298
      $region50: #{tpu_custom_call.1} parent=5 // pred_check_branch
        %301 = sbr.rel (%p299) target = $region52
      $region51: #{tpu_custom_call.1} parent=5 // pred_region
        %s302 = ssub.s32 %s14, 2
        // Predicated region
        $region53: #{tpu_custom_call.1} parent=51 // pred_check
          %p303 = pneg %p132
        $region54: #{tpu_custom_call.1} parent=51 // pred_check_branch
          %305 = sbr.rel (%p303) target = $region56
        $region55: #{tpu_custom_call.1} parent=51 // pred_region
          %s306 = sand.u32 %s117, 1
          %s307 = scalar_lea.sflag [#allocation4], %s306
          %s308 = sand.u32 %s117, 1
          %s309 = smul.addr %s308, 32
          %s310 = scalar_lea.vmem [#allocation8], %s309
          %312 = dma.done %s307, 512
        $region56: #{tpu_custom_call.1} parent=51 // pred_fallthru
          _
      $region52: #{tpu_custom_call.1} parent=5 // pred_fallthru
        _
    $region6: #{tpu_custom_call.1} parent=1 // loop_footer
      %s18 = sadd.s32 1, %s14
    $region7: #{tpu_custom_call.1} parent=1 // loop_footer_branch
      %13 = sbr.rel target = $region3
    $region8: #{tpu_custom_call.1} parent=1 // loop_exit
      _
    %313 = vsyncpa [#allocation3], 1
    %s314 = scalar_lea.sflag [#allocation3], 1
    %315 = vsyncpa %s314, 1
    %316 = vsyncpa [#allocation6], 1
    %317 = vsyncpa [#allocation4], 1
    %s318 = scalar_lea.sflag [#allocation4], 1
    %319 = vsyncpa %s318, 1

</llo_original>
